<compile_context>
chip_gen: v7x
topology: tpu7x:2x2x1
jax: 0.10.0
libtpu: 0.0.40
codegen_flags: <defaults>
</compile_context>

<pallas_src>
import functools

import jax
import jax.numpy as jnp
import numpy as np
from jax.experimental import pallas as pl
from jax.experimental.pallas import tpu as pltpu

BN_EPS = 1e-5
LRELU_SLOPE = 0.01
LANES = 128            # TPU vreg lane width: keep head matmul / store lane-dense
HALF = LANES // 2      # lane offset of the logvar half inside the fused head

# MXU operand dtype. f32 for the toy demo (tight check vs. f32 reference).
# Use jnp.bfloat16 for production-size h_n on any generation: dots keep
# preferred_element_type=f32 and all BN / exp / LeakyReLU math stays f32.
MXU_DTYPE = jnp.float32


def _leaky_relu(x):
    return jnp.where(x >= 0, x, LRELU_SLOPE * x)


def encoder_kernel(
    x_ref, eps_ref,                      # (Nc, B, D), (Nc, B, latent)
    w1_ref, g1_ref, be1_ref,             # layer 1 (Linear bias dropped: BN cancels it)
    w2_ref, g2_ref, be2_ref,             # layer 2 (Linear bias dropped: BN cancels it)
    wh_ref, bh_ref,                      # fused mu|logvar head, lane-padded to LANES
    z_ref,                               # out (Nc, B, LANES); lanes [0, latent) hold z
    eps_pad_ref,                         # VMEM scratch (Nc*B, LANES)
):
    nc, b, d = x_ref.shape
    latent = eps_ref.shape[-1]
    nb = nc * b
    mxu = w2_ref.dtype                   # bf16 in production configs, f32 otherwise

    def bn_lrelu(h, gamma, beta):
        # Train-mode BatchNorm1d (biased batch variance, one pass) + LeakyReLU.
        # Statistics are computed PER MINIBATCH (axis=1 of the (Nc, B, hp) view),
        # matching per-call semantics of the original module.
        hp = h.shape[-1]
        h3 = h.reshape(nc, b, hp)
        mean = jnp.mean(h3, axis=1, keepdims=True)
        var = jnp.mean(h3 * h3, axis=1, keepdims=True) - mean * mean
        out = gamma * (h3 - mean) * jax.lax.rsqrt(var + BN_EPS) + beta
        return _leaky_relu(out).reshape(nb, hp)

    # --- Layer 1: single K = d_dep + d_tnf matmul on the merged (Nc*B, D) view ---
    x = x_ref[...].reshape(nb, d).astype(mxu)
    h = jnp.dot(x, w1_ref[...], preferred_element_type=jnp.float32)
    h = bn_lrelu(h, g1_ref[...], be1_ref[...])

    # --- Layer 2 ------------------------------------------------------------------
    h = jnp.dot(h.astype(mxu), w2_ref[...], preferred_element_type=jnp.float32)
    h = bn_lrelu(h, g2_ref[...], be2_ref[...])

    # --- Fused heads: one lane-dense (hp, LANES) matmul -----------------------------
    # lanes [0, latent) = mu, lanes [HALF, HALF+latent) = logvar, rest = 0.
    head = jnp.dot(h.astype(mxu), wh_ref[...], preferred_element_type=jnp.float32) + bh_ref[...]

    # Lane-pad the narrow eps stream once per step via the VMEM scratch
    # (keeps the reparameterization math and the final store fully lane-dense).
    eps_pad_ref[...] = jnp.zeros_like(eps_pad_ref)
    eps_pad_ref[:, :latent] = eps_ref[...].reshape(nb, latent)
    eps_full = eps_pad_ref[...]

    # Align logvar with mu via an XLU lane rotation (HALF == LANES/2, direction-
    # symmetric). wh/bh pad columns are exactly 0, so z lanes >= latent stay benign
    # and are sliced away in the wrapper.
    logvar = pltpu.roll(head, HALF, 1)
    z = eps_full * jnp.exp(logvar * 0.5) + head
    z_ref[...] = z.reshape(nc, b, LANES)


def init_params(key, d_dep, d_tnf, h_n, latent_dim):
    """Synthetic parameters in PyTorch layout: Linear weight (out, in), bias (out,)."""
    input_len = d_dep + d_tnf
    ks = jax.random.split(key, 8)

    def lin(kw, kb, out_f, in_f):
        bound = 1.0 / np.sqrt(in_f)
        w = jax.random.uniform(kw, (out_f, in_f), jnp.float32, -bound, bound)
        b = jax.random.uniform(kb, (out_f,), jnp.float32, -bound, bound)
        return w, b

    w1, b1 = lin(ks[0], ks[1], h_n, input_len)
    w2, b2 = lin(ks[2], ks[3], h_n, h_n)
    wmu, bmu = lin(ks[4], ks[5], latent_dim, h_n)
    wlv, blv = lin(ks[6], ks[7], latent_dim, h_n)
    return {
        "w1": w1, "b1": b1,
        "g1": jnp.ones((h_n,), jnp.float32), "be1": jnp.zeros((h_n,), jnp.float32),
        "w2": w2, "b2": b2,
        "g2": jnp.ones((h_n,), jnp.float32), "be2": jnp.zeros((h_n,), jnp.float32),
        "wmu": wmu, "bmu": bmu, "wlv": wlv, "blv": blv,
    }


def prepare_params(params, latent_dim, mxu_dtype=MXU_DTYPE, lane_pad=LANES):
    """One-time transforms hoisted out of the per-call path:
       - transpose Linear weights to (in, out)
       - DROP b1/b2 (train-mode BatchNorm subtracts the batch mean -> exact cancel)
       - zero-pad h_n to a lane-aligned width hp (multiple of 128; use 256 on
         v6e/v7x production shapes to match the 256-wide MXU) with zero gamma/beta
       - fuse + lane-pad the mu/logvar heads into a single (hp, LANES) matmul
    """
    assert 2 * latent_dim <= LANES
    h_n, input_len = params["w1"].shape
    hp = ((h_n + lane_pad - 1) // lane_pad) * lane_pad

    def padw(w_t, rows, cols):
        out = jnp.zeros((rows, cols), jnp.float32)
        return out.at[: w_t.shape[0], : w_t.shape[1]].set(w_t.astype(jnp.float32))

    w1 = padw(params["w1"].T, input_len, hp)          # (input_len, hp)
    w2 = padw(params["w2"].T, hp, hp)                 # (hp, hp)

    wh = jnp.zeros((hp, LANES), jnp.float32)
    wh = wh.at[:h_n, :latent_dim].set(params["wmu"].T)
    wh = wh.at[:h_n, HALF:HALF + latent_dim].set(params["wlv"].T)
    bh = jnp.zeros((LANES,), jnp.float32)
    bh = bh.at[:latent_dim].set(params["bmu"])
    bh = bh.at[HALF:HALF + latent_dim].set(params["blv"])

    def padv(v):  # (h_n,) -> (1, hp) zero-padded row
        return jnp.zeros((1, hp), jnp.float32).at[0, :h_n].set(v.astype(jnp.float32))

    return {
        "w1": w1.astype(mxu_dtype),
        "g1": padv(params["g1"]), "be1": padv(params["be1"]),
        "w2": w2.astype(mxu_dtype),
        "g2": padv(params["g2"]), "be2": padv(params["be2"]),
        "wh": wh.astype(mxu_dtype), "bh": bh.reshape(1, LANES),
        # b1/b2 intentionally absent: Linear bias followed by train-mode BatchNorm
        # cancels exactly (mean(Wx+b) = mean(Wx)+b).
    }


def encoder_forward(depths, tnfs, eps, prepared, *, latent_dim, block_minibatches=8):
    """depths/tnfs/eps: (N, B, .) minibatches (or a single (B, .) minibatch).
    Up to `block_minibatches` independent minibatches are merged per grid step:
    the three dots run on the merged (Nc*B, .) view, BatchNorm statistics remain
    per-minibatch.  The wrapper keeps >= 2 grid steps so the "parallel" grid axis
    can occupy both v7x TensorCores."""
    squeeze = depths.ndim == 2
    if squeeze:
        depths, tnfs, eps = depths[None], tnfs[None], eps[None]

    # Layer-1 input as ONE K = d_dep + d_tnf operand (host concat is negligible).
    x = jnp.concatenate([depths.astype(jnp.float32), tnfs.astype(jnp.float32)], axis=-1)
    eps = eps.astype(jnp.float32)
    N, B, D = x.shape

    # Largest chunk size dividing N while leaving >= 2 grid steps (v7x megacore).
    cap = max(1, min(block_minibatches, N // 2))
    nc = max(d for d in range(1, cap + 1) if N % d == 0)

    p = prepared
    weights = (p["w1"], p["g1"], p["be1"], p["w2"], p["g2"], p["be2"], p["wh"], p["bh"])

    mb = lambda last: pl.BlockSpec((nc, B, last), lambda i: (i, 0, 0))
    full = lambda a: pl.BlockSpec(a.shape, lambda i, n=a.ndim: (0,) * n)

    z_pad = pl.pallas_call(
        encoder_kernel,
        grid=(N // nc,),
        in_specs=[mb(D), mb(latent_dim)] + [full(w) for w in weights],
        out_specs=pl.BlockSpec((nc, B, LANES), lambda i: (i, 0, 0)),
        out_shape=jax.ShapeDtypeStruct((N, B, LANES), jnp.float32),
        scratch_shapes=[pltpu.VMEM((nc * B, LANES), jnp.float32)],
        compiler_params=pltpu.CompilerParams(
            # Chunks are independent -> shard the grid across TensorCores (v7x).
            dimension_semantics=("parallel",),
        ),
    )(x, eps, *weights)

    z = z_pad[..., :latent_dim]
    return z[0] if squeeze else z


# ----------------------------- pure-JAX reference ------------------------------
def encoder_reference(depths, tnfs, eps, params):
    hp = jax.lax.Precision.HIGHEST
    x = jnp.concatenate([depths, tnfs], axis=-1)

    def bn(h, g, b):
        m = jnp.mean(h, axis=0, keepdims=True)
        v = jnp.mean((h - m) ** 2, axis=0, keepdims=True)
        return g * (h - m) / jnp.sqrt(v + BN_EPS) + b

    h = jnp.dot(x, params["w1"].T, precision=hp) + params["b1"]
    h = _leaky_relu(bn(h, params["g1"], params["be1"]))
    h = jnp.dot(h, params["w2"].T, precision=hp) + params["b2"]
    h = _leaky_relu(bn(h, params["g2"], params["be2"]))
    mu = jnp.dot(h, params["wmu"].T, precision=hp) + params["bmu"]
    logvar = jnp.dot(h, params["wlv"].T, precision=hp) + params["blv"]
    return eps * jnp.exp(logvar / 2) + mu


if __name__ == "__main__":
    # Shapes consistent with the module: depths (B,10), tnfs (B,22) -> input_len=32,
    # h_n=32, latent_dim=8; N=4 independent minibatches -> 2 per grid step,
    # 2 parallel grid steps.
    N, B, D_DEP, D_TNF, H_N, LATENT = 4, 8, 10, 22, 32, 8

    key = jax.random.PRNGKey(0)
    k_dep, k_tnf, k_eps, k_par = jax.random.split(key, 4)

    depths = jax.random.normal(k_dep, (N, B, D_DEP), jnp.float32)
    tnfs = jax.random.normal(k_tnf, (N, B, D_TNF), jnp.float32)
    eps = jax.random.normal(k_eps, (N, B, LATENT), jnp.float32)  # reparameterization noise

    params = init_params(k_par, D_DEP, D_TNF, H_N, LATENT)
    prepared = prepare_params(params, LATENT)                    # one-time, off the hot path

    fwd = jax.jit(functools.partial(encoder_forward, latent_dim=LATENT))
    z = fwd(depths, tnfs, eps, prepared)
    jax.block_until_ready(z)

    assert z.shape == (N, B, LATENT) and z.dtype == jnp.float32

    z_ref = jax.vmap(lambda d, t, e: encoder_reference(d, t, e, params))(depths, tnfs, eps)
    tol = 2e-3 if MXU_DTYPE == jnp.float32 else 5e-2   # looser check for bf16 MXU operands
    np.testing.assert_allclose(np.asarray(z), np.asarray(z_ref), rtol=tol, atol=tol)

    print("KERNEL_OK")
</pallas_src>

<mosaic_0001>
module attributes {stable_mosaic.version = 11 : i64} {
  func.func @encoder_kernel(%arg0: i32, %arg1: memref<2x8x32xf32, #tpu.memory_space<vmem>>, %arg2: memref<2x8x8xf32, #tpu.memory_space<vmem>>, %arg3: memref<32x128xf32, #tpu.memory_space<vmem>>, %arg4: memref<1x128xf32, #tpu.memory_space<vmem>>, %arg5: memref<1x128xf32, #tpu.memory_space<vmem>>, %arg6: memref<128x128xf32, #tpu.memory_space<vmem>>, %arg7: memref<1x128xf32, #tpu.memory_space<vmem>>, %arg8: memref<1x128xf32, #tpu.memory_space<vmem>>, %arg9: memref<128x128xf32, #tpu.memory_space<vmem>>, %arg10: memref<1x128xf32, #tpu.memory_space<vmem>>, %arg11: memref<2x8x128xf32, #tpu.memory_space<vmem>>, %arg12: memref<16x128xf32, #tpu.memory_space<vmem>>) attributes {dimension_semantics = [#tpu.dimension_semantics<parallel>], iteration_bounds = array<i64: 2>, scalar_prefetch = 0 : i64, scratch_operands = 1 : i64, tpu.core_type = #tpu.core_type<tc>, window_params = [{transform_indices = @transform_0, window_bounds = array<i64: 2, 8, 32>}, {transform_indices = @transform_1, window_bounds = array<i64: 2, 8, 8>}, {pipeline_mode = #tpu.pipeline_mode<synchronous>, transform_indices = @transform_2, window_bounds = array<i64: 32, 128>}, {pipeline_mode = #tpu.pipeline_mode<synchronous>, transform_indices = @transform_3, window_bounds = array<i64: 1, 128>}, {pipeline_mode = #tpu.pipeline_mode<synchronous>, transform_indices = @transform_4, window_bounds = array<i64: 1, 128>}, {pipeline_mode = #tpu.pipeline_mode<synchronous>, transform_indices = @transform_5, window_bounds = array<i64: 128, 128>}, {pipeline_mode = #tpu.pipeline_mode<synchronous>, transform_indices = @transform_6, window_bounds = array<i64: 1, 128>}, {pipeline_mode = #tpu.pipeline_mode<synchronous>, transform_indices = @transform_7, window_bounds = array<i64: 1, 128>}, {pipeline_mode = #tpu.pipeline_mode<synchronous>, transform_indices = @transform_8, window_bounds = array<i64: 128, 128>}, {pipeline_mode = #tpu.pipeline_mode<synchronous>, transform_indices = @transform_9, window_bounds = array<i64: 1, 128>}, {transform_indices = @transform_10, window_bounds = array<i64: 2, 8, 128>}]} {
    %c0 = arith.constant 0 : index
    %c0_0 = arith.constant 0 : index
    %c0_1 = arith.constant 0 : index
    %0 = vector.load %arg1[%c0, %c0_0, %c0_1] : memref<2x8x32xf32, #tpu.memory_space<vmem>>, vector<2x8x32xf32>
    %1 = vector.shape_cast %0 : vector<2x8x32xf32> to vector<16x32xf32>
    %c0_2 = arith.constant 0 : index
    %c0_3 = arith.constant 0 : index
    %2 = vector.load %arg3[%c0_2, %c0_3] : memref<32x128xf32, #tpu.memory_space<vmem>>, vector<32x128xf32>
    %cst = arith.constant dense<0.000000e+00> : vector<16x128xf32>
    %3 = tpu.matmul %1, %2, %cst {dimension_numbers = #tpu.dot_dimension_numbers<[1], [0], [0], [1], [0, 0, 1, 1], [], []>} : vector<16x32xf32>, vector<32x128xf32>, vector<16x128xf32> -> vector<16x128xf32>
    %c0_4 = arith.constant 0 : index
    %c0_5 = arith.constant 0 : index
    %4 = vector.load %arg4[%c0_4, %c0_5] : memref<1x128xf32, #tpu.memory_space<vmem>>, vector<1x128xf32>
    %c0_6 = arith.constant 0 : index
    %c0_7 = arith.constant 0 : index
    %5 = vector.load %arg5[%c0_6, %c0_7] : memref<1x128xf32, #tpu.memory_space<vmem>>, vector<1x128xf32>
    %6 = vector.shape_cast %3 : vector<16x128xf32> to vector<2x8x128xf32>
    %cst_8 = arith.constant dense<0.000000e+00> : vector<2x128xf32>
    %7 = vector.multi_reduction <add>, %6, %cst_8 [1] : vector<2x8x128xf32> to vector<2x128xf32>
    %8 = vector.shape_cast %7 : vector<2x128xf32> to vector<2x1x128xf32>
    %cst_9 = arith.constant 8.000000e+00 : f32
    %9 = vector.broadcast %cst_9 : f32 to vector<2x1x128xf32>
    %10 = arith.divf %8, %9 : vector<2x1x128xf32>
    %11 = arith.mulf %6, %6 : vector<2x8x128xf32>
    %cst_10 = arith.constant dense<0.000000e+00> : vector<2x128xf32>
    %12 = vector.multi_reduction <add>, %11, %cst_10 [1] : vector<2x8x128xf32> to vector<2x128xf32>
    %13 = vector.shape_cast %12 : vector<2x128xf32> to vector<2x1x128xf32>
    %cst_11 = arith.constant 8.000000e+00 : f32
    %14 = vector.broadcast %cst_11 : f32 to vector<2x1x128xf32>
    %15 = arith.divf %13, %14 : vector<2x1x128xf32>
    %16 = arith.mulf %10, %10 : vector<2x1x128xf32>
    %17 = arith.subf %15, %16 : vector<2x1x128xf32>
    %18 = vector.broadcast %10 : vector<2x1x128xf32> to vector<2x8x128xf32>
    %19 = arith.subf %6, %18 : vector<2x8x128xf32>
    %20 = vector.shape_cast %4 : vector<1x128xf32> to vector<1x1x128xf32>
    %21 = vector.broadcast %20 : vector<1x1x128xf32> to vector<2x8x128xf32>
    %22 = arith.mulf %21, %19 : vector<2x8x128xf32>
    %cst_12 = arith.constant 9.99999974E-6 : f32
    %23 = vector.broadcast %cst_12 : f32 to vector<2x1x128xf32>
    %24 = arith.addf %17, %23 : vector<2x1x128xf32>
    %25 = math.rsqrt %24 : vector<2x1x128xf32>
    %26 = vector.broadcast %25 : vector<2x1x128xf32> to vector<2x8x128xf32>
    %27 = arith.mulf %22, %26 : vector<2x8x128xf32>
    %28 = vector.shape_cast %5 : vector<1x128xf32> to vector<1x1x128xf32>
    %29 = vector.broadcast %28 : vector<1x1x128xf32> to vector<2x8x128xf32>
    %30 = arith.addf %27, %29 : vector<2x8x128xf32>
    %cst_13 = arith.constant 0.000000e+00 : f32
    %31 = vector.broadcast %cst_13 : f32 to vector<2x8x128xf32>
    %32 = arith.cmpf oge, %30, %31 : vector<2x8x128xf32>
    %cst_14 = arith.constant 0.00999999977 : f32
    %33 = vector.broadcast %cst_14 : f32 to vector<2x8x128xf32>
    %34 = arith.mulf %33, %30 : vector<2x8x128xf32>
    %35 = arith.select %32, %30, %34 : vector<2x8x128xi1>, vector<2x8x128xf32>
    %36 = vector.shape_cast %35 : vector<2x8x128xf32> to vector<16x128xf32>
    %c0_15 = arith.constant 0 : index
    %c0_16 = arith.constant 0 : index
    %37 = vector.load %arg6[%c0_15, %c0_16] : memref<128x128xf32, #tpu.memory_space<vmem>>, vector<128x128xf32>
    %cst_17 = arith.constant dense<0.000000e+00> : vector<16x128xf32>
    %38 = tpu.matmul %36, %37, %cst_17 {dimension_numbers = #tpu.dot_dimension_numbers<[1], [0], [0], [1], [0, 0, 1, 1], [], []>} : vector<16x128xf32>, vector<128x128xf32>, vector<16x128xf32> -> vector<16x128xf32>
    %c0_18 = arith.constant 0 : index
    %c0_19 = arith.constant 0 : index
    %39 = vector.load %arg7[%c0_18, %c0_19] : memref<1x128xf32, #tpu.memory_space<vmem>>, vector<1x128xf32>
    %c0_20 = arith.constant 0 : index
    %c0_21 = arith.constant 0 : index
    %40 = vector.load %arg8[%c0_20, %c0_21] : memref<1x128xf32, #tpu.memory_space<vmem>>, vector<1x128xf32>
    %41 = vector.shape_cast %38 : vector<16x128xf32> to vector<2x8x128xf32>
    %cst_22 = arith.constant dense<0.000000e+00> : vector<2x128xf32>
    %42 = vector.multi_reduction <add>, %41, %cst_22 [1] : vector<2x8x128xf32> to vector<2x128xf32>
    %43 = vector.shape_cast %42 : vector<2x128xf32> to vector<2x1x128xf32>
    %cst_23 = arith.constant 8.000000e+00 : f32
    %44 = vector.broadcast %cst_23 : f32 to vector<2x1x128xf32>
    %45 = arith.divf %43, %44 : vector<2x1x128xf32>
    %46 = arith.mulf %41, %41 : vector<2x8x128xf32>
    %cst_24 = arith.constant dense<0.000000e+00> : vector<2x128xf32>
    %47 = vector.multi_reduction <add>, %46, %cst_24 [1] : vector<2x8x128xf32> to vector<2x128xf32>
    %48 = vector.shape_cast %47 : vector<2x128xf32> to vector<2x1x128xf32>
    %cst_25 = arith.constant 8.000000e+00 : f32
    %49 = vector.broadcast %cst_25 : f32 to vector<2x1x128xf32>
    %50 = arith.divf %48, %49 : vector<2x1x128xf32>
    %51 = arith.mulf %45, %45 : vector<2x1x128xf32>
    %52 = arith.subf %50, %51 : vector<2x1x128xf32>
    %53 = vector.broadcast %45 : vector<2x1x128xf32> to vector<2x8x128xf32>
    %54 = arith.subf %41, %53 : vector<2x8x128xf32>
    %55 = vector.shape_cast %39 : vector<1x128xf32> to vector<1x1x128xf32>
    %56 = vector.broadcast %55 : vector<1x1x128xf32> to vector<2x8x128xf32>
    %57 = arith.mulf %56, %54 : vector<2x8x128xf32>
    %cst_26 = arith.constant 9.99999974E-6 : f32
    %58 = vector.broadcast %cst_26 : f32 to vector<2x1x128xf32>
    %59 = arith.addf %52, %58 : vector<2x1x128xf32>
    %60 = math.rsqrt %59 : vector<2x1x128xf32>
    %61 = vector.broadcast %60 : vector<2x1x128xf32> to vector<2x8x128xf32>
    %62 = arith.mulf %57, %61 : vector<2x8x128xf32>
    %63 = vector.shape_cast %40 : vector<1x128xf32> to vector<1x1x128xf32>
    %64 = vector.broadcast %63 : vector<1x1x128xf32> to vector<2x8x128xf32>
    %65 = arith.addf %62, %64 : vector<2x8x128xf32>
    %cst_27 = arith.constant 0.000000e+00 : f32
    %66 = vector.broadcast %cst_27 : f32 to vector<2x8x128xf32>
    %67 = arith.cmpf oge, %65, %66 : vector<2x8x128xf32>
    %cst_28 = arith.constant 0.00999999977 : f32
    %68 = vector.broadcast %cst_28 : f32 to vector<2x8x128xf32>
    %69 = arith.mulf %68, %65 : vector<2x8x128xf32>
    %70 = arith.select %67, %65, %69 : vector<2x8x128xi1>, vector<2x8x128xf32>
    %71 = vector.shape_cast %70 : vector<2x8x128xf32> to vector<16x128xf32>
    %c0_29 = arith.constant 0 : index
    %c0_30 = arith.constant 0 : index
    %72 = vector.load %arg9[%c0_29, %c0_30] : memref<128x128xf32, #tpu.memory_space<vmem>>, vector<128x128xf32>
    %cst_31 = arith.constant dense<0.000000e+00> : vector<16x128xf32>
    %73 = tpu.matmul %71, %72, %cst_31 {dimension_numbers = #tpu.dot_dimension_numbers<[1], [0], [0], [1], [0, 0, 1, 1], [], []>} : vector<16x128xf32>, vector<128x128xf32>, vector<16x128xf32> -> vector<16x128xf32>
    %c0_32 = arith.constant 0 : index
    %c0_33 = arith.constant 0 : index
    %74 = vector.load %arg10[%c0_32, %c0_33] : memref<1x128xf32, #tpu.memory_space<vmem>>, vector<1x128xf32>
    %75 = vector.broadcast %74 : vector<1x128xf32> to vector<16x128xf32>
    %76 = arith.addf %73, %75 : vector<16x128xf32>
    %cst_34 = arith.constant 0.000000e+00 : f32
    %77 = vector.broadcast %cst_34 : f32 to vector<16x128xf32>
    %c0_35 = arith.constant 0 : index
    %c0_36 = arith.constant 0 : index
    %78 = vector.load %arg12[%c0_35, %c0_36] : memref<16x128xf32, #tpu.memory_space<vmem>>, vector<16x128xf32>
    tpu.vector_store %arg12[%c0_35, %c0_36], %77 {strides = array<i32>} : memref<16x128xf32, #tpu.memory_space<vmem>>, vector<16x128xf32>,
    %c0_37 = arith.constant 0 : index
    %c0_38 = arith.constant 0 : index
    %c0_39 = arith.constant 0 : index
    %79 = vector.load %arg2[%c0_37, %c0_38, %c0_39] : memref<2x8x8xf32, #tpu.memory_space<vmem>>, vector<2x8x8xf32>
    %80 = vector.shape_cast %79 : vector<2x8x8xf32> to vector<16x8xf32>
    %c0_40 = arith.constant 0 : index
    %c0_41 = arith.constant 0 : index
    %81 = vector.load %arg12[%c0_40, %c0_41] : memref<16x128xf32, #tpu.memory_space<vmem>>, vector<16x8xf32>
    tpu.vector_store %arg12[%c0_40, %c0_41], %80 {strides = array<i32>} : memref<16x128xf32, #tpu.memory_space<vmem>>, vector<16x8xf32>,
    %c0_42 = arith.constant 0 : index
    %c0_43 = arith.constant 0 : index
    %82 = vector.load %arg12[%c0_42, %c0_43] : memref<16x128xf32, #tpu.memory_space<vmem>>, vector<16x128xf32>
    %c64_i32 = arith.constant 64 : i32
    %83 = tpu.dynamic_rotate %76 by %c64_i32 dim 1 : vector<16x128xf32>, i32 -> vector<16x128xf32>
    %cst_44 = arith.constant 5.000000e-01 : f32
    %84 = vector.broadcast %cst_44 : f32 to vector<16x128xf32>
    %85 = arith.mulf %83, %84 : vector<16x128xf32>
    %86 = math.exp %85 : vector<16x128xf32>
    %87 = arith.mulf %82, %86 : vector<16x128xf32>
    %88 = arith.addf %87, %76 : vector<16x128xf32>
    %89 = vector.shape_cast %88 : vector<16x128xf32> to vector<2x8x128xf32>
    %c0_45 = arith.constant 0 : index
    %c0_46 = arith.constant 0 : index
    %c0_47 = arith.constant 0 : index
    %90 = vector.load %arg11[%c0_45, %c0_46, %c0_47] : memref<2x8x128xf32, #tpu.memory_space<vmem>>, vector<2x8x128xf32>
    tpu.vector_store %arg11[%c0_45, %c0_46, %c0_47], %89 {strides = array<i32>} : memref<2x8x128xf32, #tpu.memory_space<vmem>>, vector<2x8x128xf32>,
    return
  }
  func.func @transform_0(%arg0: i32) -> (i32, i32, i32) {
    %c0_i32 = arith.constant 0 : i32
    %c0_i32_0 = arith.constant 0 : i32
    %c0_i32_1 = arith.constant 0 : i32
    return %arg0, %c0_i32, %c0_i32_0 : i32, i32, i32
  }
  func.func @transform_1(%arg0: i32) -> (i32, i32, i32) {
    %c0_i32 = arith.constant 0 : i32
    %c0_i32_0 = arith.constant 0 : i32
    %c0_i32_1 = arith.constant 0 : i32
    return %arg0, %c0_i32, %c0_i32_0 : i32, i32, i32
  }
  func.func @transform_2(%arg0: i32) -> (i32, i32) {
    %c0_i32 = arith.constant 0 : i32
    %c0_i32_0 = arith.constant 0 : i32
    %c0_i32_1 = arith.constant 0 : i32
    return %c0_i32, %c0_i32_0 : i32, i32
  }
  func.func @transform_3(%arg0: i32) -> (i32, i32) {
    %c0_i32 = arith.constant 0 : i32
    %c0_i32_0 = arith.constant 0 : i32
    %c0_i32_1 = arith.constant 0 : i32
    return %c0_i32, %c0_i32_0 : i32, i32
  }
  func.func @transform_4(%arg0: i32) -> (i32, i32) {
    %c0_i32 = arith.constant 0 : i32
    %c0_i32_0 = arith.constant 0 : i32
    %c0_i32_1 = arith.constant 0 : i32
    return %c0_i32, %c0_i32_0 : i32, i32
  }
  func.func @transform_5(%arg0: i32) -> (i32, i32) {
    %c0_i32 = arith.constant 0 : i32
    %c0_i32_0 = arith.constant 0 : i32
    %c0_i32_1 = arith.constant 0 : i32
    return %c0_i32, %c0_i32_0 : i32, i32
  }
  func.func @transform_6(%arg0: i32) -> (i32, i32) {
    %c0_i32 = arith.constant 0 : i32
    %c0_i32_0 = arith.constant 0 : i32
    %c0_i32_1 = arith.constant 0 : i32
    return %c0_i32, %c0_i32_0 : i32, i32
  }
  func.func @transform_7(%arg0: i32) -> (i32, i32) {
    %c0_i32 = arith.constant 0 : i32
    %c0_i32_0 = arith.constant 0 : i32
    %c0_i32_1 = arith.constant 0 : i32
    return %c0_i32, %c0_i32_0 : i32, i32
  }
  func.func @transform_8(%arg0: i32) -> (i32, i32) {
    %c0_i32 = arith.constant 0 : i32
    %c0_i32_0 = arith.constant 0 : i32
    %c0_i32_1 = arith.constant 0 : i32
    return %c0_i32, %c0_i32_0 : i32, i32
  }
  func.func @transform_9(%arg0: i32) -> (i32, i32) {
    %c0_i32 = arith.constant 0 : i32
    %c0_i32_0 = arith.constant 0 : i32
    %c0_i32_1 = arith.constant 0 : i32
    return %c0_i32, %c0_i32_0 : i32, i32
  }
  func.func @transform_10(%arg0: i32) -> (i32, i32, i32) {
    %c0_i32 = arith.constant 0 : i32
    %c0_i32_0 = arith.constant 0 : i32
    %c0_i32_1 = arith.constant 0 : i32
    return %arg0, %c0_i32, %c0_i32_0 : i32, i32, i32
  }
}

</mosaic_0001>

<llo_original>
// kernel: encoder_forward.1
$region0: #{encoder_forward.1}
  #allocation0 [shape = 'u32[]', space=smem, size = 0x4, offset = 0x4, fixed_abs, tag = 'smem constant byte address 0x4 - core index']
  #allocation1 [shape = 'u32[144,128]{1,0:T(1,128)}', space=vmem, size = 0x12000, scoped, tag = 'internal scratch']
  #allocation2 [shape = 'f32[16,128]{1,0:T(8,128)}', space=vmem, size = 0x2000, scoped, tag = 'scratch operand']
  %s0 = inlined_call_operand.vmem [shape: f32[4,8,32], index: 0, kind: input, shape index: {}]
  %s1 = inlined_call_operand.hbm [shape: f32[4,8,8], index: 1, kind: input, shape index: {}]
  %s2 = inlined_call_operand.hbm [shape: f32[32,128], index: 2, kind: input, shape index: {}]
  %s3 = inlined_call_operand.vmem [shape: f32[1,128], index: 3, kind: input, shape index: {}]
  %s4 = inlined_call_operand.vmem [shape: f32[1,128], index: 4, kind: input, shape index: {}]
  %s5 = inlined_call_operand.vmem [shape: f32[128,128], index: 5, kind: input, shape index: {}]
  %s6 = inlined_call_operand.hbm [shape: f32[1,128], index: 6, kind: input, shape index: {}]
  %s7 = inlined_call_operand.hbm [shape: f32[1,128], index: 7, kind: input, shape index: {}]
  %s8 = inlined_call_operand.hbm [shape: f32[128,128], index: 8, kind: input, shape index: {}]
  %s9 = inlined_call_operand.hbm [shape: f32[1,128], index: 9, kind: input, shape index: {}]
  %s10 = inlined_call_operand.hbm [shape: f32[4,8,128], index: 10, kind: output, shape index: {}]
  %s11 = sld [smem:[#allocation0]]
  $region97: #{encoder_forward.1} parent=0
    _
  %s13 = ssub.s32 1, %s11
  %s14 = scalar_select 0, %s13, %s11
  $region1: #{encoder_forward.1} parent=0
    #allocation3 [shape = 'u8[16384]{0}', space=vmem, size = 0x4000, scoped, tag = 'input window, operand 1']
    #allocation4 [shape = 's32[2]{0}', space=sflag, size = 0x8, scoped, tag = 'scoped memory for encoder_forward.1']
    #allocation5 [shape = 's32[2]{0}', space=sflag, size = 0x8, scoped, tag = 'scoped memory for encoder_forward.1']
    #allocation6 [shape = 'u8[16384]{0}', space=vmem, size = 0x4000, scoped, tag = 'input window, operand 2, single buffered']
    #allocation7 [shape = 's32[1]{0}', space=sflag, size = 0x4, scoped, tag = 'scoped memory for encoder_forward.1']
    #allocation8 [shape = 'u8[512]{0}', space=vmem, size = 0x400, scoped, tag = 'input window, operand 6, single buffered']
    #allocation9 [shape = 'u8[512]{0}', space=vmem, size = 0x400, scoped, tag = 'input window, operand 7, single buffered']
    #allocation10 [shape = 's32[1]{0}', space=sflag, size = 0x4, scoped, tag = 'scoped memory for encoder_forward.1']
    #allocation11 [shape = 'u8[65536]{0}', space=vmem, size = 0x10000, scoped, tag = 'input window, operand 8, single buffered']
    #allocation12 [shape = 'u8[512]{0}', space=vmem, size = 0x400, scoped, tag = 'input window, operand 9, single buffered']
    #allocation13 [shape = 's32[1]{0}', space=sflag, size = 0x4, scoped, tag = 'scoped memory for encoder_forward.1']
    #allocation14 [shape = 'u8[16384]{0}', space=vmem, size = 0x4000, scoped, tag = 'output window, operand 0']
    %15 = vsyncpa [#allocation4], 0
    %s16 = scalar_lea.sflag [#allocation4], 1
    %17 = vsyncpa %s16, 0
    %18 = vsyncpa [#allocation7], 0
    %19 = vsyncpa [#allocation10], 0
    %20 = vsyncpa [#allocation13], 0
    %21 = vsyncpa [#allocation5], 0
    %s22 = scalar_lea.sflag [#allocation5], 1
    %23 = vsyncpa %s22, 0
    loop: start=0, step=1, limit=4
    $region2: #{encoder_forward.1} parent=1 // loop_pre_header
      _
    $region3: #{encoder_forward.1} parent=1 // loop_header
      %s25 = sphi 0, %s29
      %p26 = scmp.ge.s32.totalorder %s25, 4
      %s35 = sphi 0, %s37
      %s38 = sphi 0, %s35
      %s39 = sphi 0, %s38
      %s55 = sphi 0, %s39
      %s61 = sphi 0, %s63
      %s64 = sphi 0, %s61
      %s65 = sphi 0, %s64
      %s81 = sphi 0, %s65
      %s85 = sphi 0, %s85
      %s87 = sphi 0, %s85
      %s88 = sphi 0, %s87
      %s102 = sphi 0, %s88
      %s106 = sphi 0, %s106
      %s108 = sphi 0, %s106
      %s109 = sphi 0, %s108
      %s123 = sphi 0, %s109
      %s127 = sphi 0, %s127
      %s129 = sphi 0, %s127
      %s130 = sphi 0, %s129
      %s144 = sphi 0, %s130
      %s148 = sphi 0, %s148
      %s150 = sphi 0, %s148
      %s151 = sphi 0, %s150
      %s165 = sphi 0, %s151
      %s169 = sphi 0, %s169
      %s171 = sphi 0, %s169
      %s172 = sphi 0, %s171
      %s186 = sphi 0, %s172
      %s190 = sphi 0, %s190
      %s192 = sphi 0, %s190
      %s193 = sphi 0, %s192
      %s207 = sphi 0, %s193
      %s211 = sphi 0, %s211
      %s213 = sphi 0, %s211
      %s214 = sphi 0, %s213
      %s228 = sphi 0, %s214
      %s232 = sphi 0, %s232
      %s234 = sphi 0, %s232
      %s235 = sphi 0, %s234
      %s249 = sphi 0, %s235
      %s255 = sphi 0, %s257
      %s258 = sphi 0, %s255
      %s259 = sphi 0, %s258
      %s275 = sphi 0, %s259
    $region4: #{encoder_forward.1} parent=1 // loop_header_branch
      %28 = sbr.rel (%p26) target = $region8
    $region5: #{encoder_forward.1} parent=1 // loop_body
      %s30 = ssub.s32 %s25, 1
      %s31 = ssub.s32 %s25, 2
      %s32 = sadd.s32 %s25, 1
      %s33 = ssub.s32 %s25, %s32
      %p34 = scmp.eq.s32.totalorder %s33, 0
      %s36 = sadd.s32 %s35, 1
      %s37 = scalar_select %p34, %s35, %s36
      %p40 = pneg %p34
      %p41 = scmp.eq.s32.totalorder %s25, 1
      %p42 = por %p40, %p41
      %p43 = scmp.ne.s32.totalorder %s35, %s38
      %p44 = scmp.eq.s32.totalorder %s25, 0
      %p45 = por %p43, %p44
      %p46 = scmp.ne.s32.totalorder %s35, %s38
      %p47 = scmp.eq.s32.totalorder %s30, 1
      %p48 = por %p46, %p47
      %p49 = scmp.ne.s32.totalorder %s38, %s39
      %p50 = scmp.eq.s32.totalorder %s30, 0
      %p51 = por %p49, %p50
      %p52 = scmp.ne.s32.totalorder %s38, %s39
      %p53 = scmp.eq.s32.totalorder %s31, 1
      %p54 = por %p52, %p53
      %p56 = scmp.ne.s32.totalorder %s39, %s55
      %p57 = scmp.eq.s32.totalorder %s31, 0
      %p58 = por %p56, %p57
      %s59 = ssub.s32 %s25, %s32
      %p60 = scmp.eq.s32.totalorder %s59, 0
      %s62 = sadd.s32 %s61, 1
      %s63 = scalar_select %p60, %s61, %s62
      %p66 = pneg %p60
      %p67 = scmp.eq.s32.totalorder %s25, 1
      %p68 = por %p66, %p67
      %p69 = scmp.ne.s32.totalorder %s61, %s64
      %p70 = scmp.eq.s32.totalorder %s25, 0
      %p71 = por %p69, %p70
      %p72 = scmp.ne.s32.totalorder %s61, %s64
      %p73 = scmp.eq.s32.totalorder %s30, 1
      %p74 = por %p72, %p73
      %p75 = scmp.ne.s32.totalorder %s64, %s65
      %p76 = scmp.eq.s32.totalorder %s30, 0
      %p77 = por %p75, %p76
      %p78 = scmp.ne.s32.totalorder %s64, %s65
      %p79 = scmp.eq.s32.totalorder %s31, 1
      %p80 = por %p78, %p79
      %p82 = scmp.ne.s32.totalorder %s65, %s81
      %p83 = scmp.eq.s32.totalorder %s31, 0
      %p84 = por %p82, %p83
      %s86 = sadd.s32 %s85, 1
      %p89 = scmp.eq.s32.totalorder %s25, 1
      %p90 = scmp.ne.s32.totalorder %s85, %s87
      %p91 = scmp.eq.s32.totalorder %s25, 0
      %p92 = por %p90, %p91
      %p93 = scmp.ne.s32.totalorder %s85, %s87
      %p94 = scmp.eq.s32.totalorder %s30, 1
      %p95 = por %p93, %p94
      %p96 = scmp.ne.s32.totalorder %s87, %s88
      %p97 = scmp.eq.s32.totalorder %s30, 0
      %p98 = por %p96, %p97
      %p99 = scmp.ne.s32.totalorder %s87, %s88
      %p100 = scmp.eq.s32.totalorder %s31, 1
      %p101 = por %p99, %p100
      %p103 = scmp.ne.s32.totalorder %s88, %s102
      %p104 = scmp.eq.s32.totalorder %s31, 0
      %p105 = por %p103, %p104
      %s107 = sadd.s32 %s106, 1
      %p110 = scmp.eq.s32.totalorder %s25, 1
      %p111 = scmp.ne.s32.totalorder %s106, %s108
      %p112 = scmp.eq.s32.totalorder %s25, 0
      %p113 = por %p111, %p112
      %p114 = scmp.ne.s32.totalorder %s106, %s108
      %p115 = scmp.eq.s32.totalorder %s30, 1
      %p116 = por %p114, %p115
      %p117 = scmp.ne.s32.totalorder %s108, %s109
      %p118 = scmp.eq.s32.totalorder %s30, 0
      %p119 = por %p117, %p118
      %p120 = scmp.ne.s32.totalorder %s108, %s109
      %p121 = scmp.eq.s32.totalorder %s31, 1
      %p122 = por %p120, %p121
      %p124 = scmp.ne.s32.totalorder %s109, %s123
      %p125 = scmp.eq.s32.totalorder %s31, 0
      %p126 = por %p124, %p125
      %s128 = sadd.s32 %s127, 1
      %p131 = scmp.eq.s32.totalorder %s25, 1
      %p132 = scmp.ne.s32.totalorder %s127, %s129
      %p133 = scmp.eq.s32.totalorder %s25, 0
      %p134 = por %p132, %p133
      %p135 = scmp.ne.s32.totalorder %s127, %s129
      %p136 = scmp.eq.s32.totalorder %s30, 1
      %p137 = por %p135, %p136
      %p138 = scmp.ne.s32.totalorder %s129, %s130
      %p139 = scmp.eq.s32.totalorder %s30, 0
      %p140 = por %p138, %p139
      %p141 = scmp.ne.s32.totalorder %s129, %s130
      %p142 = scmp.eq.s32.totalorder %s31, 1
      %p143 = por %p141, %p142
      %p145 = scmp.ne.s32.totalorder %s130, %s144
      %p146 = scmp.eq.s32.totalorder %s31, 0
      %p147 = por %p145, %p146
      %s149 = sadd.s32 %s148, 1
      %p152 = scmp.eq.s32.totalorder %s25, 1
      %p153 = scmp.ne.s32.totalorder %s148, %s150
      %p154 = scmp.eq.s32.totalorder %s25, 0
      %p155 = por %p153, %p154
      %p156 = scmp.ne.s32.totalorder %s148, %s150
      %p157 = scmp.eq.s32.totalorder %s30, 1
      %p158 = por %p156, %p157
      %p159 = scmp.ne.s32.totalorder %s150, %s151
      %p160 = scmp.eq.s32.totalorder %s30, 0
      %p161 = por %p159, %p160
      %p162 = scmp.ne.s32.totalorder %s150, %s151
      %p163 = scmp.eq.s32.totalorder %s31, 1
      %p164 = por %p162, %p163
      %p166 = scmp.ne.s32.totalorder %s151, %s165
      %p167 = scmp.eq.s32.totalorder %s31, 0
      %p168 = por %p166, %p167
      %s170 = sadd.s32 %s169, 1
      %p173 = scmp.eq.s32.totalorder %s25, 1
      %p174 = scmp.ne.s32.totalorder %s169, %s171
      %p175 = scmp.eq.s32.totalorder %s25, 0
      %p176 = por %p174, %p175
      %p177 = scmp.ne.s32.totalorder %s169, %s171
      %p178 = scmp.eq.s32.totalorder %s30, 1
      %p179 = por %p177, %p178
      %p180 = scmp.ne.s32.totalorder %s171, %s172
      %p181 = scmp.eq.s32.totalorder %s30, 0
      %p182 = por %p180, %p181
      %p183 = scmp.ne.s32.totalorder %s171, %s172
      %p184 = scmp.eq.s32.totalorder %s31, 1
      %p185 = por %p183, %p184
      %p187 = scmp.ne.s32.totalorder %s172, %s186
      %p188 = scmp.eq.s32.totalorder %s31, 0
      %p189 = por %p187, %p188
      %s191 = sadd.s32 %s190, 1
      %p194 = scmp.eq.s32.totalorder %s25, 1
      %p195 = scmp.ne.s32.totalorder %s190, %s192
      %p196 = scmp.eq.s32.totalorder %s25, 0
      %p197 = por %p195, %p196
      %p198 = scmp.ne.s32.totalorder %s190, %s192
      %p199 = scmp.eq.s32.totalorder %s30, 1
      %p200 = por %p198, %p199
      %p201 = scmp.ne.s32.totalorder %s192, %s193
      %p202 = scmp.eq.s32.totalorder %s30, 0
      %p203 = por %p201, %p202
      %p204 = scmp.ne.s32.totalorder %s192, %s193
      %p205 = scmp.eq.s32.totalorder %s31, 1
      %p206 = por %p204, %p205
      %p208 = scmp.ne.s32.totalorder %s193, %s207
      %p209 = scmp.eq.s32.totalorder %s31, 0
      %p210 = por %p208, %p209
      %s212 = sadd.s32 %s211, 1
      %p215 = scmp.eq.s32.totalorder %s25, 1
      %p216 = scmp.ne.s32.totalorder %s211, %s213
      %p217 = scmp.eq.s32.totalorder %s25, 0
      %p218 = por %p216, %p217
      %p219 = scmp.ne.s32.totalorder %s211, %s213
      %p220 = scmp.eq.s32.totalorder %s30, 1
      %p221 = por %p219, %p220
      %p222 = scmp.ne.s32.totalorder %s213, %s214
      %p223 = scmp.eq.s32.totalorder %s30, 0
      %p224 = por %p222, %p223
      %p225 = scmp.ne.s32.totalorder %s213, %s214
      %p226 = scmp.eq.s32.totalorder %s31, 1
      %p227 = por %p225, %p226
      %p229 = scmp.ne.s32.totalorder %s214, %s228
      %p230 = scmp.eq.s32.totalorder %s31, 0
      %p231 = por %p229, %p230
      %s233 = sadd.s32 %s232, 1
      %p236 = scmp.eq.s32.totalorder %s25, 1
      %p237 = scmp.ne.s32.totalorder %s232, %s234
      %p238 = scmp.eq.s32.totalorder %s25, 0
      %p239 = por %p237, %p238
      %p240 = scmp.ne.s32.totalorder %s232, %s234
      %p241 = scmp.eq.s32.totalorder %s30, 1
      %p242 = por %p240, %p241
      %p243 = scmp.ne.s32.totalorder %s234, %s235
      %p244 = scmp.eq.s32.totalorder %s30, 0
      %p245 = por %p243, %p244
      %p246 = scmp.ne.s32.totalorder %s234, %s235
      %p247 = scmp.eq.s32.totalorder %s31, 1
      %p248 = por %p246, %p247
      %p250 = scmp.ne.s32.totalorder %s235, %s249
      %p251 = scmp.eq.s32.totalorder %s31, 0
      %p252 = por %p250, %p251
      %s253 = ssub.s32 %s25, %s32
      %p254 = scmp.eq.s32.totalorder %s253, 0
      %s256 = sadd.s32 %s255, 1
      %s257 = scalar_select %p254, %s255, %s256
      %p260 = pneg %p254
      %p261 = scmp.eq.s32.totalorder %s25, 1
      %p262 = por %p260, %p261
      %p263 = scmp.ne.s32.totalorder %s255, %s258
      %p264 = scmp.eq.s32.totalorder %s25, 0
      %p265 = por %p263, %p264
      %p266 = scmp.ne.s32.totalorder %s255, %s258
      %p267 = scmp.eq.s32.totalorder %s30, 1
      %p268 = por %p266, %p267
      %p269 = scmp.ne.s32.totalorder %s258, %s259
      %p270 = scmp.eq.s32.totalorder %s30, 0
      %p271 = por %p269, %p270
      %p272 = scmp.ne.s32.totalorder %s258, %s259
      %p273 = scmp.eq.s32.totalorder %s31, 1
      %p274 = por %p272, %p273
      %p276 = scmp.ne.s32.totalorder %s259, %s275
      %p277 = scmp.eq.s32.totalorder %s31, 0
      %p278 = por %p276, %p277
      %p279 = scmp.le.s32.totalorder 1, %s25
      %p280 = scmp.lt.s32.totalorder %s25, 3
      %p281 = pnand %p279, %p280
      %p282 = pneg %p281
      // Predicated region
      $region9: #{encoder_forward.1} parent=5 // pred_check
        _
      $region10: #{encoder_forward.1} parent=5 // pred_check_branch
        %284 = sbr.rel (%p281) target = $region12
      $region11: #{encoder_forward.1} parent=5 // pred_region
        %s285 = ssub.s32 %s25, 1
        // Predicated region
        $region13: #{encoder_forward.1} parent=11 // pred_check
          %p286 = pneg %p98
        $region14: #{encoder_forward.1} parent=11 // pred_check_branch
          %288 = sbr.rel (%p286) target = $region16
        $region15: #{encoder_forward.1} parent=11 // pred_region
          %s290 = ssub.s32 512, 512
          %291 = vsyncadd [#allocation7], %s290
          %s292 = sshll.u32 [#allocation6], 4
          %s293 = int_to_ptr.vmem [resolvable:$true] %s292
          %298 = dma.hbm_to_vmem [thread:$0]  %s2, 512, %s293, [#allocation7], 128, 128, 8
        $region16: #{encoder_forward.1} parent=11 // pred_fallthru
          _
        // Predicated region
        $region17: #{encoder_forward.1} parent=11 // pred_check
          %p299 = pneg %p119
        $region18: #{encoder_forward.1} parent=11 // pred_check_branch
          %301 = sbr.rel (%p299) target = $region20
        $region19: #{encoder_forward.1} parent=11 // pred_region
          _
        $region20: #{encoder_forward.1} parent=11 // pred_fallthru
          _
        // Predicated region
        $region21: #{encoder_forward.1} parent=11 // pred_check
          %p302 = pneg %p140
        $region22: #{encoder_forward.1} parent=11 // pred_check_branch
          %304 = sbr.rel (%p302) target = $region24
        $region23: #{encoder_forward.1} parent=11 // pred_region
          _
        $region24: #{encoder_forward.1} parent=11 // pred_fallthru
          _
        // Predicated region
        $region25: #{encoder_forward.1} parent=11 // pred_check
          %p305 = pneg %p161
        $region26: #{encoder_forward.1} parent=11 // pred_check_branch
          %307 = sbr.rel (%p305) target = $region28
        $region27: #{encoder_forward.1} parent=11 // pred_region
          _
        $region28: #{encoder_forward.1} parent=11 // pred_fallthru
          _
        // Predicated region
        $region29: #{encoder_forward.1} parent=11 // pred_check
          %p308 = pneg %p182
        $region30: #{encoder_forward.1} parent=11 // pred_check_branch
          %310 = sbr.rel (%p308) target = $region32
        $region31: #{encoder_forward.1} parent=11 // pred_region
          %s312 = ssub.s32 16, 16
          %313 = vsyncadd [#allocation7], %s312
          %s315 = sshll.u32 [#allocation8], 4
          %s316 = int_to_ptr.vmem [resolvable:$true] %s315
          %318 = dma.hbm_to_vmem [thread:$0]  %s6, 16, %s316, [#allocation7]
        $region32: #{encoder_forward.1} parent=11 // pred_fallthru
          _
        // Predicated region
        $region33: #{encoder_forward.1} parent=11 // pred_check
          %p319 = pneg %p203
        $region34: #{encoder_forward.1} parent=11 // pred_check_branch
          %321 = sbr.rel (%p319) target = $region36
        $region35: #{encoder_forward.1} parent=11 // pred_region
          %s323 = ssub.s32 16, 16
          %324 = vsyncadd [#allocation10], %s323
          %s326 = sshll.u32 [#allocation9], 4
          %s327 = int_to_ptr.vmem [resolvable:$true] %s326
          %329 = dma.hbm_to_vmem [thread:$0]  %s7, 16, %s327, [#allocation10]
        $region36: #{encoder_forward.1} parent=11 // pred_fallthru
          _
        // Predicated region
        $region37: #{encoder_forward.1} parent=11 // pred_check
          %p330 = pneg %p224
        $region38: #{encoder_forward.1} parent=11 // pred_check_branch
          %332 = sbr.rel (%p330) target = $region40
        $region39: #{encoder_forward.1} parent=11 // pred_region
          %s334 = ssub.s32 2048, 2048
          %335 = vsyncadd [#allocation10], %s334
          %s336 = sshll.u32 [#allocation11], 4
          %s337 = int_to_ptr.vmem [resolvable:$true] %s336
          %342 = dma.hbm_to_vmem [thread:$0]  %s8, 2048, %s337, [#allocation10], 128, 128, 8
        $region40: #{encoder_forward.1} parent=11 // pred_fallthru
          _
        // Predicated region
        $region41: #{encoder_forward.1} parent=11 // pred_check
          %p343 = pneg %p245
        $region42: #{encoder_forward.1} parent=11 // pred_check_branch
          %345 = sbr.rel (%p343) target = $region44
        $region43: #{encoder_forward.1} parent=11 // pred_region
          %s347 = ssub.s32 16, 16
          %348 = vsyncadd [#allocation13], %s347
          %s350 = sshll.u32 [#allocation12], 4
          %s351 = int_to_ptr.vmem [resolvable:$true] %s350
          %353 = dma.hbm_to_vmem [thread:$0]  %s9, 16, %s351, [#allocation13]
        $region44: #{encoder_forward.1} parent=11 // pred_fallthru
          _
      $region12: #{encoder_forward.1} parent=5 // pred_fallthru
        _
      %p354 = scmp.lt.s32.totalorder %s25, 2
      // Predicated region
      $region45: #{encoder_forward.1} parent=5 // pred_check
        %p355 = pneg %p354
      $region46: #{encoder_forward.1} parent=5 // pred_check_branch
        %357 = sbr.rel (%p355) target = $region48
      $region47: #{encoder_forward.1} parent=5 // pred_region
        // Predicated region
        $region49: #{encoder_forward.1} parent=47 // pred_check
          %p358 = pneg %p45
        $region50: #{encoder_forward.1} parent=47 // pred_check_branch
          %360 = sbr.rel (%p358) target = $region52
        $region51: #{encoder_forward.1} parent=47 // pred_region
          %s361 = smul.u32 2, %s25
          %p362 = scmp.lt.s32.totalorder %s361, 3
          %s363 = scalar_select %p362, %s361, 3
          %s364 = smul.addr %s363, 8
          %s365 = scalar_lea.vmem %s0, %s364
          %s366 = smul.u32 2, %s25
        $region52: #{encoder_forward.1} parent=47 // pred_fallthru
          _
        // Predicated region
        $region53: #{encoder_forward.1} parent=47 // pred_check
          %p367 = pneg %p71
        $region54: #{encoder_forward.1} parent=47 // pred_check_branch
          %369 = sbr.rel (%p367) target = $region56
        $region55: #{encoder_forward.1} parent=47 // pred_region
          %s370 = sand.u32 %s61, 1
          %s371 = scalar_lea.sflag [#allocation4], %s370
          %s372 = sand.u32 %s61, 1
          %s373 = smul.addr %s372, 16
          %s374 = scalar_lea.vmem [#allocation3], %s373
          %s375 = smul.u32 2, %s25
          %s377 = ssub.s32 256, 256
          %378 = vsyncadd %s371, %s377
          %s379 = smul.addr %s375, 128
          %s380 = scalar_lea.hbm %s1, %s379
          %s381 = sshll.u32 %s374, 4
          %s382 = int_to_ptr.vmem [resolvable:$true] %s381
          %387 = dma.hbm_to_vmem [thread:$0]  %s380, 256, %s382, %s371, 128, 128, 8
        $region56: #{encoder_forward.1} parent=47 // pred_fallthru
          _
      $region48: #{encoder_forward.1} parent=5 // pred_fallthru
        _
      %p388 = scmp.le.s32.totalorder 1, %s25
      %p389 = scmp.lt.s32.totalorder %s25, 3
      %p390 = pnand %p388, %p389
      %p391 = pneg %p390
      // Predicated region
      $region57: #{encoder_forward.1} parent=5 // pred_check
        _
      $region58: #{encoder_forward.1} parent=5 // pred_check_branch
        %393 = sbr.rel (%p390) target = $region60
      $region59: #{encoder_forward.1} parent=5 // pred_region
        %s394 = ssub.s32 %s25, 1
        %s395 = sand.u32 %s64, 1
        %s396 = scalar_lea.sflag [#allocation4], %s395
        %s397 = sand.u32 %s64, 1
        %s398 = smul.addr %s397, 16
        %s399 = scalar_lea.vmem [#allocation3], %s398
        // Predicated region
        $region61: #{encoder_forward.1} parent=59 // pred_check
          %p400 = pneg %p77
        $region62: #{encoder_forward.1} parent=59 // pred_check_branch
          %402 = sbr.rel (%p400) target = $region64
        $region63: #{encoder_forward.1} parent=59 // pred_region
          %403 = dma.done %s396, 256
        $region64: #{encoder_forward.1} parent=59 // pred_fallthru
          _
        // Predicated region
        $region65: #{encoder_forward.1} parent=59 // pred_check
          %p404 = pneg %p98
        $region66: #{encoder_forward.1} parent=59 // pred_check_branch
          %406 = sbr.rel (%p404) target = $region68
        $region67: #{encoder_forward.1} parent=59 // pred_region
          %407 = dma.done [#allocation7], 512
        $region68: #{encoder_forward.1} parent=59 // pred_fallthru
          _
        // Predicated region
        $region69: #{encoder_forward.1} parent=59 // pred_check
          %p408 = pneg %p182
        $region70: #{encoder_forward.1} parent=59 // pred_check_branch
          %410 = sbr.rel (%p408) target = $region72
        $region71: #{encoder_forward.1} parent=59 // pred_region
          %411 = dma.done [#allocation7], 16
        $region72: #{encoder_forward.1} parent=59 // pred_fallthru
          _
        // Predicated region
        $region73: #{encoder_forward.1} parent=59 // pred_check
          %p412 = pneg %p203
        $region74: #{encoder_forward.1} parent=59 // pred_check_branch
          %414 = sbr.rel (%p412) target = $region76
        $region75: #{encoder_forward.1} parent=59 // pred_region
          %415 = dma.done [#allocation10], 16
        $region76: #{encoder_forward.1} parent=59 // pred_fallthru
          _
        // Predicated region
        $region77: #{encoder_forward.1} parent=59 // pred_check
          %p416 = pneg %p224
        $region78: #{encoder_forward.1} parent=59 // pred_check_branch
          %418 = sbr.rel (%p416) target = $region80
        $region79: #{encoder_forward.1} parent=59 // pred_region
          %419 = dma.done [#allocation10], 2048
        $region80: #{encoder_forward.1} parent=59 // pred_fallthru
          _
        // Predicated region
        $region81: #{encoder_forward.1} parent=59 // pred_check
          %p420 = pneg %p245
        $region82: #{encoder_forward.1} parent=59 // pred_check_branch
          %422 = sbr.rel (%p420) target = $region84
        $region83: #{encoder_forward.1} parent=59 // pred_region
          %423 = dma.done [#allocation13], 16
        $region84: #{encoder_forward.1} parent=59 // pred_fallthru
          _
        %s424 = smul.u32 2, %s30
        %p425 = scmp.lt.s32.totalorder %s424, 3
        %s426 = scalar_select %p425, %s424, 3
        %s427 = smul.addr %s426, 8
        %s428 = scalar_lea.vmem %s0, %s427
        %p429 = pneg %p51
        %p430 = pneg %p48
        %s431 = sand.u32 %s64, 1
        %s432 = scalar_lea.sflag [#allocation4], %s431
        %s433 = sand.u32 %s64, 1
        %s434 = smul.addr %s433, 16
        %s435 = scalar_lea.vmem [#allocation3], %s434
        %p436 = pneg %p77
        %p437 = pneg %p74
        %p438 = pneg %p98
        %p439 = pneg %p95
        %p440 = pneg %p119
        %p441 = pneg %p116
        %p442 = pneg %p140
        %p443 = pneg %p137
        %p444 = pneg %p161
        %p445 = pneg %p158
        %p446 = pneg %p182
        %p447 = pneg %p179
        %p448 = pneg %p203
        %p449 = pneg %p200
        %p450 = pneg %p224
        %p451 = pneg %p221
        %p452 = pneg %p245
        %p453 = pneg %p242
        %p454 = pneg %p271
        %p455 = pneg %p268
        %s456 = sand.u32 %s258, 1
        %s457 = scalar_lea.sflag [#allocation5], %s456
        %s458 = sand.u32 %s258, 1
        %s459 = smul.addr %s458, 16
        %s460 = scalar_lea.vmem [#allocation14], %s459
        %s461 = smul.u32 2, %s30
        %p462 = scmp.lt.s32.totalorder %s461, 3
        %s463 = scalar_select %p462, %s461, 3
        %s464 = smul.addr %s463, 8
        %s465 = scalar_lea.vmem %s0, %s464
        %s466 = smul.u32 2, %s30
        %s467 = smul.u32 2, %s30
        %s468 = smul.u32 2, %s30
        %v469 = vld [vmem:[%s465] sm:$0xff]
        %v470 = vld [vmem:[%s465 + $0x8] sm:$0xff]
        %v471 = vld [vmem:[#allocation6] sm:$0xff]
        %v472 = vld [vmem:[#allocation6 + $0x8] sm:$0xff]
        %v473 = vld [vmem:[#allocation6 + $0x10] sm:$0xff]
        %v474 = vld [vmem:[#allocation6 + $0x18] sm:$0xff]
        %vm475 = vcmask 261120
        %v477 = vsel %vm475, %v469, 0
        %v480 = vsel %vm475, %v470, 0
        %482 = vmatprep.subr.mxu0 0.0
        %483 = vmatpush1.msra.mxu0 %v471
        %484 = vmatprep.subr.mxu0 0.0
        %485 = vmatpush1.msra.mxu0 %v472
        %486 = vmatprep.subr.mxu0 0.0
        %487 = vmatpush1.msra.mxu0 %v473
        %488 = vmatprep.subr.mxu0 0.0
        %489 = vmatpush1.msra.mxu0 %v474
        %490 = vmatprep.subr.mxu0 0.0
        %491 = vmatpush1.msra.mxu0 0.0
        %492 = vmatprep.subr.mxu0 0.0
        %493 = vmatpush1.msra.mxu0 0.0
        %494 = vmatprep.subr.mxu0 0.0
        %495 = vmatpush1.msra.mxu0 0.0
        %496 = vmatprep.subr.mxu0 0.0
        %497 = vmatpush1.msra.mxu0 0.0
        %498 = vmatprep.subr.mxu0 0.0
        %499 = vmatpush1.msra.mxu0 0.0
        %500 = vmatprep.subr.mxu0 0.0
        %501 = vmatpush1.msra.mxu0 0.0
        %502 = vmatprep.subr.mxu0 0.0
        %503 = vmatpush1.msra.mxu0 0.0
        %504 = vmatprep.subr.mxu0 0.0
        %505 = vmatpush1.msra.mxu0 0.0
        %506 = vmatprep.subr.mxu0 0.0
        %507 = vmatpush1.msra.mxu0 0.0
        %508 = vmatprep.subr.mxu0 0.0
        %509 = vmatpush1.msra.mxu0 0.0
        %510 = vmatprep.subr.mxu0 0.0
        %511 = vmatpush1.msra.mxu0 0.0
        %512 = vmatprep.subr.mxu0 0.0
        %513 = vmatpush1.msra.mxu0 0.0
        %514 = vmatprep.subr.mxu0 0.0
        %515 = vmatpush1.msra.mxu0 0.0
        %516 = vmatprep.subr.mxu0 0.0
        %517 = vmatpush1.msra.mxu0 0.0
        %518 = vmatprep.subr.mxu0 0.0
        %519 = vmatpush1.msra.mxu0 0.0
        %520 = vmatprep.subr.mxu0 0.0
        %521 = vmatpush1.msra.mxu0 0.0
        %522 = vmatprep.subr.mxu0 0.0
        %523 = vmatpush1.msra.mxu0 0.0
        %524 = vmatprep.subr.mxu0 0.0
        %525 = vmatpush1.msra.mxu0 0.0
        %526 = vmatprep.subr.mxu0 0.0
        %527 = vmatpush1.msra.mxu0 0.0
        %528 = vmatprep.subr.mxu0 0.0
        %529 = vmatpush1.msra.mxu0 0.0
        %530 = vmatprep.subr.mxu0 0.0
        %531 = vmatpush1.msra.mxu0 0.0
        %532 = vmatprep.subr.mxu0 0.0
        %533 = vmatpush1.msra.mxu0 0.0
        %534 = vmatprep.subr.mxu0 0.0
        %535 = vmatpush1.msra.mxu0 0.0
        %536 = vmatprep.subr.mxu0 0.0
        %537 = vmatpush1.msra.mxu0 0.0
        %538 = vmatprep.subr.mxu0 0.0
        %539 = vmatpush1.msra.mxu0 0.0
        %540 = vmatprep.subr.mxu0 0.0
        %541 = vmatpush1.msra.mxu0 0.0
        %542 = vmatprep.subr.mxu0 0.0
        %543 = vmatpush1.msra.mxu0 0.0
        %544 = vmatprep.subr.mxu0 0.0
        %545 = vmatpush1.msra.mxu0 0.0
        %546 = vmatprep.mubr.f32.mxu0 0.0
        %547 = vmatmul.mubr.f32.gmra.mrb[0].mxu0 %v477
        %v548 = vpop.f32.mrb[0].mxu0
        %v549 = vadd.f32 0.0, %v548
        %v550 = vpop.f32.mrb[0].mxu0
        %551 = vmatprep.mubr.f32.mxu0 0.0
        %552 = vmatmul.mubr.f32.gmra.mrb[0].mxu0 %v480
        %v553 = vpop.f32.mrb[0].mxu0
        %v554 = vadd.f32 0.0, %v553
        %v555 = vpop.f32.mrb[0].mxu0
        %556 = vdwg.mxu0
        %v557 = vld [vmem:[%s3] sm:$0x1]
        %v558 = vld [vmem:[%s4] sm:$0x1]
        %v559 = vrot.slane %v549, 4
        %v560 = vadd.f32 %v549, %v559
        %v561 = vrot.slane %v560, 2
        %v562 = vadd.f32 %v560, %v561
        %v563 = vrot.slane %v562, 1
        %v564 = vadd.f32 %v562, %v563
        %v565 = vrot.slane %v554, 4
        %v566 = vadd.f32 %v554, %v565
        %v567 = vrot.slane %v566, 2
        %v568 = vadd.f32 %v566, %v567
        %v569 = vrot.slane %v568, 1
        %v570 = vadd.f32 %v568, %v569
        %v571 = vrcp.pop 8.0
        %v572 = vmul.f32 %v564, %v571
        %v573 = vmul.f32 %v570, %v571
        %v574 = vmul.f32 %v549, %v549
        %v575 = vmul.f32 %v554, %v554
        %v576 = vrot.slane %v574, 4
        %v577 = vadd.f32 %v574, %v576
        %v578 = vrot.slane %v577, 2
        %v579 = vadd.f32 %v577, %v578
        %v580 = vrot.slane %v579, 1
        %v581 = vadd.f32 %v579, %v580
        %v582 = vrot.slane %v575, 4
        %v583 = vadd.f32 %v575, %v582
        %v584 = vrot.slane %v583, 2
        %v585 = vadd.f32 %v583, %v584
        %v586 = vrot.slane %v585, 1
        %v587 = vadd.f32 %v585, %v586
        %v588 = vmul.f32 %v581, %v571
        %v589 = vmul.f32 %v587, %v571
        %v590 = vmul.f32 %v572, %v572
        %v591 = vmul.f32 %v573, %v573
        %v592 = vsub.f32 %v588, %v590
        %v593 = vsub.f32 %v589, %v591
        %v594 = vsub.f32 %v549, %v572
        %v595 = vsub.f32 %v554, %v573
        %v597 = vlaneseq
        %v598 = vshrl.u32 %v597, 7
        %v599 = vsub.s32 0, %v598
        %v600 = vrot.slane %v557, %v599
        %v602 = vmul.f32 %v600, %v594
        %v603 = vmul.f32 %v600, %v595
        %v604 = vadd.f32 %v592, 1e-05
        %v605 = vadd.f32 %v593, 1e-05
        %v606 = vrsqrt.pop %v604
        %v607 = vrsqrt.pop %v605
        %v608 = vmul.f32 %v602, %v606
        %v609 = vmul.f32 %v603, %v607
        %v611 = vlaneseq
        %v612 = vshrl.u32 %v611, 7
        %v613 = vsub.s32 0, %v612
        %v614 = vrot.slane %v558, %v613
        %v616 = vadd.f32 %v608, %v614
        %v617 = vadd.f32 %v609, %v614
        %vm618 = vcmp.ge.f32.partialorder %v616, 0.0
        %vm619 = vcmp.ge.f32.partialorder %v617, 0.0
        %v620 = vmul.f32 %v616, 0.01
        %v621 = vmul.f32 %v617, 0.01
        %v622 = vsel %vm618, %v616, %v620
        %v623 = vsel %vm619, %v617, %v621
        %v624 = vld [vmem:[%s5] sm:$0xff]
        %v625 = vld [vmem:[%s5 + $0x8] sm:$0xff]
        %v626 = vld [vmem:[%s5 + $0x10] sm:$0xff]
        %v627 = vld [vmem:[%s5 + $0x18] sm:$0xff]
        %v628 = vld [vmem:[%s5 + $0x20] sm:$0xff]
        %v629 = vld [vmem:[%s5 + $0x28] sm:$0xff]
        %v630 = vld [vmem:[%s5 + $0x30] sm:$0xff]
        %v631 = vld [vmem:[%s5 + $0x38] sm:$0xff]
        %v632 = vld [vmem:[%s5 + $0x40] sm:$0xff]
        %v633 = vld [vmem:[%s5 + $0x48] sm:$0xff]
        %v634 = vld [vmem:[%s5 + $0x50] sm:$0xff]
        %v635 = vld [vmem:[%s5 + $0x58] sm:$0xff]
        %v636 = vld [vmem:[%s5 + $0x60] sm:$0xff]
        %v637 = vld [vmem:[%s5 + $0x68] sm:$0xff]
        %v638 = vld [vmem:[%s5 + $0x70] sm:$0xff]
        %v639 = vld [vmem:[%s5 + $0x78] sm:$0xff]
        %640 = vmatprep.subr.mxu0 0.0
        %641 = vmatpush1.msra.mxu0 %v624
        %642 = vmatprep.subr.mxu0 0.0
        %643 = vmatpush1.msra.mxu0 %v625
        %644 = vmatprep.subr.mxu0 0.0
        %645 = vmatpush1.msra.mxu0 %v626
        %646 = vmatprep.subr.mxu0 0.0
        %647 = vmatpush1.msra.mxu0 %v627
        %648 = vmatprep.subr.mxu0 0.0
        %649 = vmatpush1.msra.mxu0 %v628
        %650 = vmatprep.subr.mxu0 0.0
        %651 = vmatpush1.msra.mxu0 %v629
        %652 = vmatprep.subr.mxu0 0.0
        %653 = vmatpush1.msra.mxu0 %v630
        %654 = vmatprep.subr.mxu0 0.0
        %655 = vmatpush1.msra.mxu0 %v631
        %656 = vmatprep.subr.mxu0 0.0
        %657 = vmatpush1.msra.mxu0 %v632
        %658 = vmatprep.subr.mxu0 0.0
        %659 = vmatpush1.msra.mxu0 %v633
        %660 = vmatprep.subr.mxu0 0.0
        %661 = vmatpush1.msra.mxu0 %v634
        %662 = vmatprep.subr.mxu0 0.0
        %663 = vmatpush1.msra.mxu0 %v635
        %664 = vmatprep.subr.mxu0 0.0
        %665 = vmatpush1.msra.mxu0 %v636
        %666 = vmatprep.subr.mxu0 0.0
        %667 = vmatpush1.msra.mxu0 %v637
        %668 = vmatprep.subr.mxu0 0.0
        %669 = vmatpush1.msra.mxu0 %v638
        %670 = vmatprep.subr.mxu0 0.0
        %671 = vmatpush1.msra.mxu0 %v639
        %672 = vmatprep.subr.mxu0 0.0
        %673 = vmatpush1.msra.mxu0 0.0
        %674 = vmatprep.subr.mxu0 0.0
        %675 = vmatpush1.msra.mxu0 0.0
        %676 = vmatprep.subr.mxu0 0.0
        %677 = vmatpush1.msra.mxu0 0.0
        %678 = vmatprep.subr.mxu0 0.0
        %679 = vmatpush1.msra.mxu0 0.0
        %680 = vmatprep.subr.mxu0 0.0
        %681 = vmatpush1.msra.mxu0 0.0
        %682 = vmatprep.subr.mxu0 0.0
        %683 = vmatpush1.msra.mxu0 0.0
        %684 = vmatprep.subr.mxu0 0.0
        %685 = vmatpush1.msra.mxu0 0.0
        %686 = vmatprep.subr.mxu0 0.0
        %687 = vmatpush1.msra.mxu0 0.0
        %688 = vmatprep.subr.mxu0 0.0
        %689 = vmatpush1.msra.mxu0 0.0
        %690 = vmatprep.subr.mxu0 0.0
        %691 = vmatpush1.msra.mxu0 0.0
        %692 = vmatprep.subr.mxu0 0.0
        %693 = vmatpush1.msra.mxu0 0.0
        %694 = vmatprep.subr.mxu0 0.0
        %695 = vmatpush1.msra.mxu0 0.0
        %696 = vmatprep.subr.mxu0 0.0
        %697 = vmatpush1.msra.mxu0 0.0
        %698 = vmatprep.subr.mxu0 0.0
        %699 = vmatpush1.msra.mxu0 0.0
        %700 = vmatprep.subr.mxu0 0.0
        %701 = vmatpush1.msra.mxu0 0.0
        %702 = vmatprep.subr.mxu0 0.0
        %703 = vmatpush1.msra.mxu0 0.0
        %704 = vmatprep.mubr.f32.mxu0 0.0
        %705 = vmatmul.mubr.f32.gmra.mrb[0].mxu0 %v622
        %v706 = vpop.f32.mrb[0].mxu0
        %v707 = vadd.f32 0.0, %v706
        %v708 = vpop.f32.mrb[0].mxu0
        %709 = vmatprep.mubr.f32.mxu0 0.0
        %710 = vmatmul.mubr.f32.gmra.mrb[0].mxu0 %v623
        %v711 = vpop.f32.mrb[0].mxu0
        %v712 = vadd.f32 0.0, %v711
        %v713 = vpop.f32.mrb[0].mxu0
        %714 = vdwg.mxu0
        %v715 = vld [vmem:[#allocation8] sm:$0x1]
        %v716 = vld [vmem:[#allocation9] sm:$0x1]
        %v717 = vrot.slane %v707, 4
        %v718 = vadd.f32 %v707, %v717
        %v719 = vrot.slane %v718, 2
        %v720 = vadd.f32 %v718, %v719
        %v721 = vrot.slane %v720, 1
        %v722 = vadd.f32 %v720, %v721
        %v723 = vrot.slane %v712, 4
        %v724 = vadd.f32 %v712, %v723
        %v725 = vrot.slane %v724, 2
        %v726 = vadd.f32 %v724, %v725
        %v727 = vrot.slane %v726, 1
        %v728 = vadd.f32 %v726, %v727
        %v729 = vmul.f32 %v722, %v571
        %v730 = vmul.f32 %v728, %v571
        %v731 = vmul.f32 %v707, %v707
        %v732 = vmul.f32 %v712, %v712
        %v733 = vrot.slane %v731, 4
        %v734 = vadd.f32 %v731, %v733
        %v735 = vrot.slane %v734, 2
        %v736 = vadd.f32 %v734, %v735
        %v737 = vrot.slane %v736, 1
        %v738 = vadd.f32 %v736, %v737
        %v739 = vrot.slane %v732, 4
        %v740 = vadd.f32 %v732, %v739
        %v741 = vrot.slane %v740, 2
        %v742 = vadd.f32 %v740, %v741
        %v743 = vrot.slane %v742, 1
        %v744 = vadd.f32 %v742, %v743
        %v745 = vmul.f32 %v738, %v571
        %v746 = vmul.f32 %v744, %v571
        %v747 = vmul.f32 %v729, %v729
        %v748 = vmul.f32 %v730, %v730
        %v749 = vsub.f32 %v745, %v747
        %v750 = vsub.f32 %v746, %v748
        %v751 = vsub.f32 %v707, %v729
        %v752 = vsub.f32 %v712, %v730
        %v754 = vlaneseq
        %v755 = vshrl.u32 %v754, 7
        %v756 = vsub.s32 0, %v755
        %v757 = vrot.slane %v715, %v756
        %v759 = vmul.f32 %v757, %v751
        %v760 = vmul.f32 %v757, %v752
        %v761 = vadd.f32 %v749, 1e-05
        %v762 = vadd.f32 %v750, 1e-05
        %v763 = vrsqrt.pop %v761
        %v764 = vrsqrt.pop %v762
        %v765 = vmul.f32 %v759, %v763
        %v766 = vmul.f32 %v760, %v764
        %v768 = vlaneseq
        %v769 = vshrl.u32 %v768, 7
        %v770 = vsub.s32 0, %v769
        %v771 = vrot.slane %v716, %v770
        %v773 = vadd.f32 %v765, %v771
        %v774 = vadd.f32 %v766, %v771
        %vm775 = vcmp.ge.f32.partialorder %v773, 0.0
        %vm776 = vcmp.ge.f32.partialorder %v774, 0.0
        %v777 = vmul.f32 %v773, 0.01
        %v778 = vmul.f32 %v774, 0.01
        %v779 = vsel %vm775, %v773, %v777
        %v780 = vsel %vm776, %v774, %v778
        %v781 = vld [vmem:[#allocation11] sm:$0xff]
        %v782 = vld [vmem:[#allocation11 + $0x8] sm:$0xff]
        %v783 = vld [vmem:[#allocation11 + $0x10] sm:$0xff]
        %v784 = vld [vmem:[#allocation11 + $0x18] sm:$0xff]
        %v785 = vld [vmem:[#allocation11 + $0x20] sm:$0xff]
        %v786 = vld [vmem:[#allocation11 + $0x28] sm:$0xff]
        %v787 = vld [vmem:[#allocation11 + $0x30] sm:$0xff]
        %v788 = vld [vmem:[#allocation11 + $0x38] sm:$0xff]
        %v789 = vld [vmem:[#allocation11 + $0x40] sm:$0xff]
        %v790 = vld [vmem:[#allocation11 + $0x48] sm:$0xff]
        %v791 = vld [vmem:[#allocation11 + $0x50] sm:$0xff]
        %v792 = vld [vmem:[#allocation11 + $0x58] sm:$0xff]
        %v793 = vld [vmem:[#allocation11 + $0x60] sm:$0xff]
        %v794 = vld [vmem:[#allocation11 + $0x68] sm:$0xff]
        %v795 = vld [vmem:[#allocation11 + $0x70] sm:$0xff]
        %v796 = vld [vmem:[#allocation11 + $0x78] sm:$0xff]
        %v797 = vld [vmem:[#allocation12] sm:$0x1]
        %v799 = vlaneseq
        %v800 = vshrl.u32 %v799, 7
        %v801 = vsub.s32 0, %v800
        %v802 = vrot.slane %v797, %v801
        %804 = vmatprep.subr.mxu0 0.0
        %805 = vmatpush1.msra.mxu0 %v781
        %806 = vmatprep.subr.mxu0 0.0
        %807 = vmatpush1.msra.mxu0 %v782
        %808 = vmatprep.subr.mxu0 0.0
        %809 = vmatpush1.msra.mxu0 %v783
        %810 = vmatprep.subr.mxu0 0.0
        %811 = vmatpush1.msra.mxu0 %v784
        %812 = vmatprep.subr.mxu0 0.0
        %813 = vmatpush1.msra.mxu0 %v785
        %814 = vmatprep.subr.mxu0 0.0
        %815 = vmatpush1.msra.mxu0 %v786
        %816 = vmatprep.subr.mxu0 0.0
        %817 = vmatpush1.msra.mxu0 %v787
        %818 = vmatprep.subr.mxu0 0.0
        %819 = vmatpush1.msra.mxu0 %v788
        %820 = vmatprep.subr.mxu0 0.0
        %821 = vmatpush1.msra.mxu0 %v789
        %822 = vmatprep.subr.mxu0 0.0
        %823 = vmatpush1.msra.mxu0 %v790
        %824 = vmatprep.subr.mxu0 0.0
        %825 = vmatpush1.msra.mxu0 %v791
        %826 = vmatprep.subr.mxu0 0.0
        %827 = vmatpush1.msra.mxu0 %v792
        %828 = vmatprep.subr.mxu0 0.0
        %829 = vmatpush1.msra.mxu0 %v793
        %830 = vmatprep.subr.mxu0 0.0
        %831 = vmatpush1.msra.mxu0 %v794
        %832 = vmatprep.subr.mxu0 0.0
        %833 = vmatpush1.msra.mxu0 %v795
        %834 = vmatprep.subr.mxu0 0.0
        %835 = vmatpush1.msra.mxu0 %v796
        %836 = vmatprep.subr.mxu0 0.0
        %837 = vmatpush1.msra.mxu0 0.0
        %838 = vmatprep.subr.mxu0 0.0
        %839 = vmatpush1.msra.mxu0 0.0
        %840 = vmatprep.subr.mxu0 0.0
        %841 = vmatpush1.msra.mxu0 0.0
        %842 = vmatprep.subr.mxu0 0.0
        %843 = vmatpush1.msra.mxu0 0.0
        %844 = vmatprep.subr.mxu0 0.0
        %845 = vmatpush1.msra.mxu0 0.0
        %846 = vmatprep.subr.mxu0 0.0
        %847 = vmatpush1.msra.mxu0 0.0
        %848 = vmatprep.subr.mxu0 0.0
        %849 = vmatpush1.msra.mxu0 0.0
        %850 = vmatprep.subr.mxu0 0.0
        %851 = vmatpush1.msra.mxu0 0.0
        %852 = vmatprep.subr.mxu0 0.0
        %853 = vmatpush1.msra.mxu0 0.0
        %854 = vmatprep.subr.mxu0 0.0
        %855 = vmatpush1.msra.mxu0 0.0
        %856 = vmatprep.subr.mxu0 0.0
        %857 = vmatpush1.msra.mxu0 0.0
        %858 = vmatprep.subr.mxu0 0.0
        %859 = vmatpush1.msra.mxu0 0.0
        %860 = vmatprep.subr.mxu0 0.0
        %861 = vmatpush1.msra.mxu0 0.0
        %862 = vmatprep.subr.mxu0 0.0
        %863 = vmatpush1.msra.mxu0 0.0
        %864 = vmatprep.subr.mxu0 0.0
        %865 = vmatpush1.msra.mxu0 0.0
        %866 = vmatprep.subr.mxu0 0.0
        %867 = vmatpush1.msra.mxu0 0.0
        %868 = vmatprep.mubr.f32.mxu0 0.0
        %869 = vmatmul.mubr.f32.gmra.mrb[0].mxu0 %v779
        %v870 = vpop.f32.mrb[0].mxu0
        %v871 = vadd.f32 %v802, %v870
        %v872 = vpop.f32.mrb[0].mxu0
        %873 = vmatprep.mubr.f32.mxu0 0.0
        %874 = vmatmul.mubr.f32.gmra.mrb[0].mxu0 %v780
        %v875 = vpop.f32.mrb[0].mxu0
        %v876 = vadd.f32 %v802, %v875
        %v877 = vpop.f32.mrb[0].mxu0
        %878 = vdwg.mxu0
        %879 = vst [vmem:[#allocation2] sm:$0xff] 0.0
        %880 = vst [vmem:[#allocation2 + $0x8] sm:$0xff] 0.0
        %v881 = vld [vmem:[%s399] sm:$0xff]
        %v882 = vld [vmem:[%s399 + $0x8] sm:$0xff]
        %vm883 = vcmask 64512
        %884 = vst.msk [vmem:[#allocation2] sm:$0xff] %vm883, %v881
        %885 = vst.msk [vmem:[#allocation2 + $0x8] sm:$0xff] %vm883, %v882
        %v886 = vld [vmem:[#allocation2] sm:$0xff]
        %v887 = vld [vmem:[#allocation2 + $0x8] sm:$0xff]
        %888 = vrot.lane.b32.xlu0 %v871, 64
        %v889 = vpop.permute.xlu0 %888
        %890 = vrot.lane.b32.xlu0 %v876, 64
        %v891 = vpop.permute.xlu0 %890
        %v892 = vmul.f32 %v889, 0.5
        %v893 = vmul.f32 %v891, 0.5
        %v894 = vmul.f32 %v892, 1.442695
        %v895 = vpow.pop %v894
        %v896 = vmul.f32 %v893, 1.442695
        %v897 = vpow.pop %v896
        %v898 = vmul.f32 %v886, %v895
        %v899 = vmul.f32 %v887, %v897
        %v900 = vadd.f32 %v898, %v871
        %v901 = vadd.f32 %v899, %v876
        %902 = vst [vmem:[%s460] sm:$0xff] %v900
        %903 = vst [vmem:[%s460 + $0x8] sm:$0xff] %v901
        %s904 = sand.u32 %s258, 1
        %s905 = scalar_lea.sflag [#allocation5], %s904
        %s906 = sand.u32 %s258, 1
        %s907 = smul.addr %s906, 16
        %s908 = scalar_lea.vmem [#allocation14], %s907
        // Predicated region
        $region85: #{encoder_forward.1} parent=59 // pred_check
          %p909 = pneg %p268
        $region86: #{encoder_forward.1} parent=59 // pred_check_branch
          %911 = sbr.rel (%p909) target = $region88
        $region87: #{encoder_forward.1} parent=59 // pred_region
          %s912 = smul.u32 2, %s30
          %s914 = ssub.s32 256, 256
          %915 = vsyncadd %s905, %s914
          %s916 = smul.addr %s912, 128
          %s917 = scalar_lea.hbm %s10, %s916
          %s918 = sshll.u32 %s908, 4
          %s919 = int_to_ptr.vmem [resolvable:$true] %s918
          %924 = dma.vmem_to_hbm [thread:$0]  %s919, 256, %s917, %s905, 128, 128, 8
        $region88: #{encoder_forward.1} parent=59 // pred_fallthru
          _
      $region60: #{encoder_forward.1} parent=5 // pred_fallthru
        _
      %p925 = scmp.le.s32.totalorder 2, %s25
      // Predicated region
      $region89: #{encoder_forward.1} parent=5 // pred_check
        %p926 = pneg %p925
      $region90: #{encoder_forward.1} parent=5 // pred_check_branch
        %928 = sbr.rel (%p926) target = $region92
      $region91: #{encoder_forward.1} parent=5 // pred_region
        %s929 = ssub.s32 %s25, 2
        // Predicated region
        $region93: #{encoder_forward.1} parent=91 // pred_check
          %p930 = pneg %p274
        $region94: #{encoder_forward.1} parent=91 // pred_check_branch
          %932 = sbr.rel (%p930) target = $region96
        $region95: #{encoder_forward.1} parent=91 // pred_region
          %s933 = sand.u32 %s259, 1
          %s934 = scalar_lea.sflag [#allocation5], %s933
          %s935 = sand.u32 %s259, 1
          %s936 = smul.addr %s935, 16
          %s937 = scalar_lea.vmem [#allocation14], %s936
          %938 = dma.done %s934, 256
        $region96: #{encoder_forward.1} parent=91 // pred_fallthru
          _
      $region92: #{encoder_forward.1} parent=5 // pred_fallthru
        _
    $region6: #{encoder_forward.1} parent=1 // loop_footer
      %s29 = sadd.s32 1, %s25
    $region7: #{encoder_forward.1} parent=1 // loop_footer_branch
      %24 = sbr.rel target = $region3
    $region8: #{encoder_forward.1} parent=1 // loop_exit
      _
    %939 = vsyncpa [#allocation4], 1
    %s940 = scalar_lea.sflag [#allocation4], 1
    %941 = vsyncpa %s940, 1
    %942 = vsyncpa [#allocation7], 1
    %943 = vsyncpa [#allocation10], 1
    %944 = vsyncpa [#allocation13], 1
    %945 = vsyncpa [#allocation5], 1
    %s946 = scalar_lea.sflag [#allocation5], 1
    %947 = vsyncpa %s946, 1

</llo_original>
